<compile_context>
chip_gen: v6e
topology: v6e:2x2x1
jax: 0.10.0
libtpu: 0.0.40
codegen_flags: <defaults>
</compile_context>

<pallas_src>
import functools

import jax
import jax.numpy as jnp
from jax.experimental import pallas as pl
from jax.experimental.pallas import tpu as pltpu


# --------------------------------------------------------------------------
# Kernel
# --------------------------------------------------------------------------
def _mlpae_kernel(x_ref, we1_ref, we2_ref, we3_ref,
                  wd1_ref, wd2_ref, wd3_ref,
                  xx_ref, enc_ref):
    """Whole AE forward for one batch tile. All matmuls hit the MXU.

    Operands are in the compute dtype (bf16 by default); every matmul
    accumulates in f32, ReLU runs in f32, then the activation is cast back to
    the compute dtype for the next MXU pass.
    """
    cd = x_ref.dtype
    x = x_ref[...]

    # ----- encoder -----
    h = jnp.dot(x, we1_ref[...], preferred_element_type=jnp.float32)
    h = jnp.maximum(h, 0.0).astype(cd)                                   # ReLU
    h = jnp.dot(h, we2_ref[...], preferred_element_type=jnp.float32)
    h = jnp.maximum(h, 0.0).astype(cd)                                   # ReLU
    enc = jnp.dot(h, we3_ref[...], preferred_element_type=jnp.float32)   # Identity

    # ----- decoder -----
    h = jnp.dot(enc.astype(cd), wd1_ref[...], preferred_element_type=jnp.float32)
    h = jnp.maximum(h, 0.0).astype(cd)                                   # ReLU
    h = jnp.dot(h, wd2_ref[...], preferred_element_type=jnp.float32)
    h = jnp.maximum(h, 0.0).astype(cd)                                   # ReLU
    xx = jnp.dot(h, wd3_ref[...], preferred_element_type=jnp.float32)    # Identity

    enc_ref[...] = enc.astype(enc_ref.dtype)
    xx_ref[...] = xx.astype(xx_ref.dtype)


# --------------------------------------------------------------------------
# Wrapper
# --------------------------------------------------------------------------
def _round_up(n, m):
    return ((n + m - 1) // m) * m


def _pad2d(w, rows, cols):
    r, c = w.shape
    return jnp.pad(w, ((0, rows - r), (0, cols - c)))


def _vmem_estimate(bt, Fp, H1p, H2p, Ep, w_elems, cd_bytes, out_bytes):
    """Rough VMEM footprint (bytes) for one grid step (double-buffered streams)."""
    weights = w_elems * cd_bytes                      # resident, single copy
    x_stream = 2 * bt * Fp * cd_bytes                 # double-buffered input
    out_stream = 2 * bt * (Fp + Ep) * out_bytes       # double-buffered outputs
    # f32 intermediates / accumulators live in VMEM+vregs between matmuls.
    inter = 3 * bt * max(Fp, H1p, H2p, Ep) * 4
    return weights + x_stream + out_stream + inter


@functools.partial(jax.jit, static_argnames=("batch_tile", "compute_dtype"))
def mlp_ae_forward(x, weights, batch_tile=256, compute_dtype=jnp.bfloat16):
    """Run the MlpAE forward pass.

    Args:
      x: [B, F] float32 input.
      weights: tuple of 6 weight matrices, each already [in, out]:
        (we1, we2, we3, wd1, wd2, wd3)
      batch_tile: target rows of x processed per grid step (rounded to a
        multiple of 8; the batch is zero-padded to a multiple of the tile and
        the tile is shrunk if the VMEM budget requires it).
      compute_dtype: dtype of MXU operands (bf16 default; f32 accumulation
        either way).

    Returns:
      (xx, enc): reconstruction [B, F] and embedding [B, E], in x.dtype.
    """
    we1, we2, we3, wd1, wd2, wd3 = weights
    B, F = x.shape
    H1 = we1.shape[1]
    H2 = we2.shape[1]
    E = we3.shape[1]

    # Lane-dense (multiple-of-128) feature widths. Padding columns/rows are
    # zero so they contribute nothing and ReLU keeps them zero.
    Fp, H1p, H2p, Ep = (_round_up(d, 128) for d in (F, H1, H2, E))

    cd = compute_dtype
    out_dtype = x.dtype
    cd_bytes = jnp.dtype(cd).itemsize
    out_bytes = jnp.dtype(out_dtype).itemsize
    w_elems = (Fp * H1p + H1p * H2p + H2p * Ep
               + Ep * H2p + H2p * H1p + H1p * Fp)

    # Batch tiling: tile rounded to the 8-row sublane granule.
    bt = max(8, _round_up(min(batch_tile, max(B, 1)), 8))
    # Shrink the tile until the per-step VMEM footprint fits a conservative
    # budget (48 MiB leaves headroom on v7x's 64 MiB VMEM).
    VMEM_BUDGET = 48 * 1024 * 1024
    while bt > 8 and _vmem_estimate(bt, Fp, H1p, H2p, Ep,
                                    w_elems, cd_bytes, out_bytes) > VMEM_BUDGET:
        bt = max(8, _round_up(bt // 2, 8))
    # Ensure >=2 grid steps when possible so ("parallel",) can shard the batch
    # axis across v7x's 2 TensorCores.
    if _round_up(B, bt) // bt < 2:
        half = max(8, _round_up(pl.cdiv(max(B, 1), 2), 8))
        bt = min(bt, half)
    Bp = _round_up(max(B, 1), bt)
    grid = (Bp // bt,)

    # Pad + cast inputs (wrapper-side XLA ops; trivial next to the kernel).
    xp = jnp.zeros((Bp, Fp), cd).at[:B, :F].set(x.astype(cd))
    w_pads = (
        _pad2d(we1.astype(cd), Fp, H1p),
        _pad2d(we2.astype(cd), H1p, H2p),
        _pad2d(we3.astype(cd), H2p, Ep),
        _pad2d(wd1.astype(cd), Ep, H2p),
        _pad2d(wd2.astype(cd), H2p, H1p),
        _pad2d(wd3.astype(cd), H1p, Fp),
    )
    # NOTE: the six weights stay as separate full-array resident blocks (index
    # map is constant, so each is DMA'd once); a single concatenated slab can
    # blow up VMEM when F >> H, so it is intentionally not done here.

    flops = 2 * Bp * w_elems
    bytes_accessed = (
        Bp * Fp * cd_bytes                                    # x in
        + w_elems * cd_bytes                                  # weights in
        + Bp * Fp * out_bytes + Bp * Ep * out_bytes           # xx, enc out
    )
    cost = pl.CostEstimate(flops=int(flops), transcendentals=0,
                           bytes_accessed=int(bytes_accessed))

    # Raise the scoped-VMEM limit only when the footprint needs it (clamped
    # to v7x's physical 64 MiB so the same code compiles on every chip).
    est = _vmem_estimate(bt, Fp, H1p, H2p, Ep, w_elems, cd_bytes, out_bytes)
    vmem_limit = None
    if est > 24 * 1024 * 1024:
        vmem_limit = int(min(est * 13 // 10 + (1 << 20), 64 * 1024 * 1024))

    def x_map(i):
        return (i, 0)

    def w_map(i):
        return (0, 0)

    weight_specs = [pl.BlockSpec(w.shape, w_map) for w in w_pads]

    xx_p, enc_p = pl.pallas_call(
        _mlpae_kernel,
        grid=grid,
        in_specs=[pl.BlockSpec((bt, Fp), x_map)] + weight_specs,
        out_specs=[
            pl.BlockSpec((bt, Fp), x_map),
            pl.BlockSpec((bt, Ep), x_map),
        ],
        out_shape=[
            jax.ShapeDtypeStruct((Bp, Fp), out_dtype),
            jax.ShapeDtypeStruct((Bp, Ep), out_dtype),
        ],
        compiler_params=pltpu.CompilerParams(
            dimension_semantics=("parallel",),
            vmem_limit_bytes=vmem_limit),
        cost_estimate=cost,
    )(xp, *w_pads)

    return xx_p[:B, :F], enc_p[:B, :E]


# --------------------------------------------------------------------------
# Params init + pure-JAX reference
# --------------------------------------------------------------------------
def init_mlpae_params(key, n_features, n_hidden, n_emb, dtype=jnp.float32):
    """Deterministic init mimicking torch.nn.Linear default (U(+/- 1/sqrt(fan_in))).

    Returns weights already transposed to [in, out] for the kernel.
    """
    dims_enc = [n_features] + list(n_hidden) + [n_emb]
    dims_dec = [n_emb] + list(n_hidden[::-1]) + [n_features]

    weights = []
    for (din, dout) in list(zip(dims_enc[:-1], dims_enc[1:])) + \
                       list(zip(dims_dec[:-1], dims_dec[1:])):
        key, sub = jax.random.split(key)
        bound = 1.0 / jnp.sqrt(jnp.array(din, dtype))
        w = jax.random.uniform(sub, (din, dout), dtype, minval=-bound, maxval=bound)
        weights.append(w)
    return tuple(weights)


def mlp_ae_reference(x, weights):
    """Pure-JAX f32 reference of the same forward pass (for correctness check)."""
    we1, we2, we3, wd1, wd2, wd3 = weights
    h = jnp.maximum(x @ we1, 0.0)
    h = jnp.maximum(h @ we2, 0.0)
    enc = h @ we3
    h = jnp.maximum(enc @ wd1, 0.0)
    h = jnp.maximum(h @ wd2, 0.0)
    xx = h @ wd3
    return xx, enc


# TODO(synk): batch_norm / dropout / skip_connection='concat' branches of
# LinearBlock are off in the default MlpAE config and are not implemented here.

if __name__ == "__main__":
    # Small shapes consistent with the module (MlpAE defaults scaled down):
    # n_features=32, n_hidden=[64, 48], n_emb=16, batch=8.
    n_features = 32
    n_hidden = [64, 48]
    n_emb = 16
    batch = 8

    key = jax.random.PRNGKey(0)
    kx, kw = jax.random.split(key)
    x = jax.random.normal(kx, (batch, n_features), jnp.float32)
    weights = init_mlpae_params(kw, n_features, n_hidden, n_emb)

    xx_ref, enc_ref = mlp_ae_reference(x, weights)

    # f32 compute path: bit-for-bit the original semantics -> tight tolerance.
    xx32, enc32 = mlp_ae_forward(x, weights, batch_tile=256,
                                 compute_dtype=jnp.float32)
    jax.block_until_ready((xx32, enc32))
    assert xx32.shape == (batch, n_features)
    assert enc32.shape == (batch, n_emb)
    assert jnp.allclose(xx32, xx_ref, atol=1e-5, rtol=1e-5)
    assert jnp.allclose(enc32, enc_ref, atol=1e-5, rtol=1e-5)

    # default bf16 compute path (f32 accumulation) -> loose tolerance vs f32.
    xx, enc = mlp_ae_forward(x, weights)
    jax.block_until_ready((xx, enc))
    assert xx.shape == (batch, n_features)
    assert enc.shape == (batch, n_emb)
    assert jnp.allclose(xx, xx_ref, atol=5e-2, rtol=5e-2)
    assert jnp.allclose(enc, enc_ref, atol=5e-2, rtol=5e-2)

    # Ragged batch + multi-step grid (exercises padding + pipelining paths).
    batch2 = 20
    x2 = jax.random.normal(jax.random.PRNGKey(1), (batch2, n_features), jnp.float32)
    xx2_ref, enc2_ref = mlp_ae_reference(x2, weights)
    xx2, enc2 = mlp_ae_forward(x2, weights, batch_tile=8,
                               compute_dtype=jnp.float32)
    jax.block_until_ready((xx2, enc2))
    assert xx2.shape == (batch2, n_features)
    assert enc2.shape == (batch2, n_emb)
    assert jnp.allclose(xx2, xx2_ref, atol=1e-5, rtol=1e-5)
    assert jnp.allclose(enc2, enc2_ref, atol=1e-5, rtol=1e-5)

    print("KERNEL_OK")
</pallas_src>

<mosaic_0001>
module attributes {stable_mosaic.version = 11 : i64} {
  func.func @_mlpae_kernel(%arg0: i32, %arg1: memref<8x128xf32, #tpu.memory_space<vmem>>, %arg2: memref<128x128xf32, #tpu.memory_space<vmem>>, %arg3: memref<128x128xf32, #tpu.memory_space<vmem>>, %arg4: memref<128x128xf32, #tpu.memory_space<vmem>>, %arg5: memref<128x128xf32, #tpu.memory_space<vmem>>, %arg6: memref<128x128xf32, #tpu.memory_space<vmem>>, %arg7: memref<128x128xf32, #tpu.memory_space<vmem>>, %arg8: memref<8x128xf32, #tpu.memory_space<vmem>>, %arg9: memref<8x128xf32, #tpu.memory_space<vmem>>) attributes {dimension_semantics = [#tpu.dimension_semantics<parallel>], iteration_bounds = array<i64: 1>, scalar_prefetch = 0 : i64, scratch_operands = 0 : i64, tpu.core_type = #tpu.core_type<tc>, window_params = [{transform_indices = @transform_0, window_bounds = array<i64: 8, 128>}, {pipeline_mode = #tpu.pipeline_mode<synchronous>, transform_indices = @transform_1, window_bounds = array<i64: 128, 128>}, {pipeline_mode = #tpu.pipeline_mode<synchronous>, transform_indices = @transform_2, window_bounds = array<i64: 128, 128>}, {pipeline_mode = #tpu.pipeline_mode<synchronous>, transform_indices = @transform_3, window_bounds = array<i64: 128, 128>}, {pipeline_mode = #tpu.pipeline_mode<synchronous>, transform_indices = @transform_4, window_bounds = array<i64: 128, 128>}, {pipeline_mode = #tpu.pipeline_mode<synchronous>, transform_indices = @transform_5, window_bounds = array<i64: 128, 128>}, {pipeline_mode = #tpu.pipeline_mode<synchronous>, transform_indices = @transform_6, window_bounds = array<i64: 128, 128>}, {transform_indices = @transform_7, window_bounds = array<i64: 8, 128>}, {transform_indices = @transform_8, window_bounds = array<i64: 8, 128>}]} {
    %c0 = arith.constant 0 : index
    %c0_0 = arith.constant 0 : index
    %0 = vector.load %arg1[%c0, %c0_0] : memref<8x128xf32, #tpu.memory_space<vmem>>, vector<8x128xf32>
    %c0_1 = arith.constant 0 : index
    %c0_2 = arith.constant 0 : index
    %1 = vector.load %arg2[%c0_1, %c0_2] : memref<128x128xf32, #tpu.memory_space<vmem>>, vector<128x128xf32>
    %cst = arith.constant dense<0.000000e+00> : vector<8x128xf32>
    %2 = tpu.matmul %0, %1, %cst {dimension_numbers = #tpu.dot_dimension_numbers<[1], [0], [0], [1], [0, 0, 1, 1], [], []>} : vector<8x128xf32>, vector<128x128xf32>, vector<8x128xf32> -> vector<8x128xf32>
    %cst_3 = arith.constant 0.000000e+00 : f32
    %3 = vector.broadcast %cst_3 : f32 to vector<8x128xf32>
    %4 = arith.maximumf %2, %3 : vector<8x128xf32>
    %c0_4 = arith.constant 0 : index
    %c0_5 = arith.constant 0 : index
    %5 = vector.load %arg3[%c0_4, %c0_5] : memref<128x128xf32, #tpu.memory_space<vmem>>, vector<128x128xf32>
    %cst_6 = arith.constant dense<0.000000e+00> : vector<8x128xf32>
    %6 = tpu.matmul %4, %5, %cst_6 {dimension_numbers = #tpu.dot_dimension_numbers<[1], [0], [0], [1], [0, 0, 1, 1], [], []>} : vector<8x128xf32>, vector<128x128xf32>, vector<8x128xf32> -> vector<8x128xf32>
    %cst_7 = arith.constant 0.000000e+00 : f32
    %7 = vector.broadcast %cst_7 : f32 to vector<8x128xf32>
    %8 = arith.maximumf %6, %7 : vector<8x128xf32>
    %c0_8 = arith.constant 0 : index
    %c0_9 = arith.constant 0 : index
    %9 = vector.load %arg4[%c0_8, %c0_9] : memref<128x128xf32, #tpu.memory_space<vmem>>, vector<128x128xf32>
    %cst_10 = arith.constant dense<0.000000e+00> : vector<8x128xf32>
    %10 = tpu.matmul %8, %9, %cst_10 {dimension_numbers = #tpu.dot_dimension_numbers<[1], [0], [0], [1], [0, 0, 1, 1], [], []>} : vector<8x128xf32>, vector<128x128xf32>, vector<8x128xf32> -> vector<8x128xf32>
    %c0_11 = arith.constant 0 : index
    %c0_12 = arith.constant 0 : index
    %11 = vector.load %arg5[%c0_11, %c0_12] : memref<128x128xf32, #tpu.memory_space<vmem>>, vector<128x128xf32>
    %cst_13 = arith.constant dense<0.000000e+00> : vector<8x128xf32>
    %12 = tpu.matmul %10, %11, %cst_13 {dimension_numbers = #tpu.dot_dimension_numbers<[1], [0], [0], [1], [0, 0, 1, 1], [], []>} : vector<8x128xf32>, vector<128x128xf32>, vector<8x128xf32> -> vector<8x128xf32>
    %cst_14 = arith.constant 0.000000e+00 : f32
    %13 = vector.broadcast %cst_14 : f32 to vector<8x128xf32>
    %14 = arith.maximumf %12, %13 : vector<8x128xf32>
    %c0_15 = arith.constant 0 : index
    %c0_16 = arith.constant 0 : index
    %15 = vector.load %arg6[%c0_15, %c0_16] : memref<128x128xf32, #tpu.memory_space<vmem>>, vector<128x128xf32>
    %cst_17 = arith.constant dense<0.000000e+00> : vector<8x128xf32>
    %16 = tpu.matmul %14, %15, %cst_17 {dimension_numbers = #tpu.dot_dimension_numbers<[1], [0], [0], [1], [0, 0, 1, 1], [], []>} : vector<8x128xf32>, vector<128x128xf32>, vector<8x128xf32> -> vector<8x128xf32>
    %cst_18 = arith.constant 0.000000e+00 : f32
    %17 = vector.broadcast %cst_18 : f32 to vector<8x128xf32>
    %18 = arith.maximumf %16, %17 : vector<8x128xf32>
    %c0_19 = arith.constant 0 : index
    %c0_20 = arith.constant 0 : index
    %19 = vector.load %arg7[%c0_19, %c0_20] : memref<128x128xf32, #tpu.memory_space<vmem>>, vector<128x128xf32>
    %cst_21 = arith.constant dense<0.000000e+00> : vector<8x128xf32>
    %20 = tpu.matmul %18, %19, %cst_21 {dimension_numbers = #tpu.dot_dimension_numbers<[1], [0], [0], [1], [0, 0, 1, 1], [], []>} : vector<8x128xf32>, vector<128x128xf32>, vector<8x128xf32> -> vector<8x128xf32>
    %c0_22 = arith.constant 0 : index
    %c0_23 = arith.constant 0 : index
    %21 = vector.load %arg9[%c0_22, %c0_23] : memref<8x128xf32, #tpu.memory_space<vmem>>, vector<8x128xf32>
    tpu.vector_store %arg9[%c0_22, %c0_23], %10 {strides = array<i32>} : memref<8x128xf32, #tpu.memory_space<vmem>>, vector<8x128xf32>,
    %c0_24 = arith.constant 0 : index
    %c0_25 = arith.constant 0 : index
    %22 = vector.load %arg8[%c0_24, %c0_25] : memref<8x128xf32, #tpu.memory_space<vmem>>, vector<8x128xf32>
    tpu.vector_store %arg8[%c0_24, %c0_25], %20 {strides = array<i32>} : memref<8x128xf32, #tpu.memory_space<vmem>>, vector<8x128xf32>,
    return
  }
  func.func @transform_0(%arg0: i32) -> (i32, i32) {
    %c0_i32 = arith.constant 0 : i32
    %c0_i32_0 = arith.constant 0 : i32
    return %arg0, %c0_i32 : i32, i32
  }
  func.func @transform_1(%arg0: i32) -> (i32, i32) {
    %c0_i32 = arith.constant 0 : i32
    %c0_i32_0 = arith.constant 0 : i32
    %c0_i32_1 = arith.constant 0 : i32
    return %c0_i32, %c0_i32_0 : i32, i32
  }
  func.func @transform_2(%arg0: i32) -> (i32, i32) {
    %c0_i32 = arith.constant 0 : i32
    %c0_i32_0 = arith.constant 0 : i32
    %c0_i32_1 = arith.constant 0 : i32
    return %c0_i32, %c0_i32_0 : i32, i32
  }
  func.func @transform_3(%arg0: i32) -> (i32, i32) {
    %c0_i32 = arith.constant 0 : i32
    %c0_i32_0 = arith.constant 0 : i32
    %c0_i32_1 = arith.constant 0 : i32
    return %c0_i32, %c0_i32_0 : i32, i32
  }
  func.func @transform_4(%arg0: i32) -> (i32, i32) {
    %c0_i32 = arith.constant 0 : i32
    %c0_i32_0 = arith.constant 0 : i32
    %c0_i32_1 = arith.constant 0 : i32
    return %c0_i32, %c0_i32_0 : i32, i32
  }
  func.func @transform_5(%arg0: i32) -> (i32, i32) {
    %c0_i32 = arith.constant 0 : i32
    %c0_i32_0 = arith.constant 0 : i32
    %c0_i32_1 = arith.constant 0 : i32
    return %c0_i32, %c0_i32_0 : i32, i32
  }
  func.func @transform_6(%arg0: i32) -> (i32, i32) {
    %c0_i32 = arith.constant 0 : i32
    %c0_i32_0 = arith.constant 0 : i32
    %c0_i32_1 = arith.constant 0 : i32
    return %c0_i32, %c0_i32_0 : i32, i32
  }
  func.func @transform_7(%arg0: i32) -> (i32, i32) {
    %c0_i32 = arith.constant 0 : i32
    %c0_i32_0 = arith.constant 0 : i32
    return %arg0, %c0_i32 : i32, i32
  }
  func.func @transform_8(%arg0: i32) -> (i32, i32) {
    %c0_i32 = arith.constant 0 : i32
    %c0_i32_0 = arith.constant 0 : i32
    return %arg0, %c0_i32 : i32, i32
  }
}

</mosaic_0001>

<llo_original>
// kernel: mlp_ae_forward.1
$region0: #{mlp_ae_forward.1}
  #allocation0 [shape = 'u32[]', space=smem, size = 0x4, offset = 0x4, fixed_abs, tag = 'smem constant byte address 0x4 - core index']
  #allocation1 [shape = 'u32[144,128]{1,0:T(1,128)}', space=vmem, size = 0x12000, scoped, tag = 'internal scratch']
  %s0 = inlined_call_operand.vmem [shape: f32[8,128], index: 0, kind: input, shape index: {}]
  %s1 = inlined_call_operand.vmem [shape: f32[128,128], index: 1, kind: input, shape index: {}]
  %s2 = inlined_call_operand.vmem [shape: f32[128,128], index: 2, kind: input, shape index: {}]
  %s3 = inlined_call_operand.vmem [shape: f32[128,128], index: 3, kind: input, shape index: {}]
  %s4 = inlined_call_operand.vmem [shape: f32[128,128], index: 4, kind: input, shape index: {}]
  %s5 = inlined_call_operand.vmem [shape: f32[128,128], index: 5, kind: input, shape index: {}]
  %s6 = inlined_call_operand.vmem [shape: f32[128,128], index: 6, kind: input, shape index: {}]
  %s7 = inlined_call_operand.hbm [shape: f32[8,128], index: 7, kind: output, shape index: {0}]
  %s8 = inlined_call_operand.hbm [shape: f32[8,128], index: 8, kind: output, shape index: {1}]
  %9 = xla_tuple %s7, %s8
  %s10 = sld [smem:[#allocation0]]
  $region46: #{mlp_ae_forward.1} parent=0
    _
  %s12 = ssub.s32 1, %s10
  %s13 = scalar_select 0, %s12, %s10
  $region1: #{mlp_ae_forward.1} parent=0
    #allocation2 [shape = 'u8[4096]{0}', space=vmem, size = 0x1000, scoped, tag = 'output window, operand 0, single buffered']
    #allocation3 [shape = 's32[1]{0}', space=sflag, size = 0x4, scoped, tag = 'scoped memory for mlp_ae_forward.1']
    #allocation4 [shape = 'u8[4096]{0}', space=vmem, size = 0x1000, scoped, tag = 'output window, operand 1, single buffered']
    #allocation5 [shape = 's32[1]{0}', space=sflag, size = 0x4, scoped, tag = 'scoped memory for mlp_ae_forward.1']
    %14 = vsyncpa [#allocation3], 0
    %15 = vsyncpa [#allocation5], 0
    // Predicated region
    $region2: #{mlp_ae_forward.1} parent=1 // pred_check
      _
    $region3: #{mlp_ae_forward.1} parent=1 // pred_check_branch
      %17 = sbr.rel (0) target = $region5
    $region4: #{mlp_ae_forward.1} parent=1 // pred_region
      _
    $region5: #{mlp_ae_forward.1} parent=1 // pred_fallthru
      _
    // Predicated region
    $region6: #{mlp_ae_forward.1} parent=1 // pred_check
      _
    $region7: #{mlp_ae_forward.1} parent=1 // pred_check_branch
      %19 = sbr.rel (0) target = $region9
    $region8: #{mlp_ae_forward.1} parent=1 // pred_region
      _
    $region9: #{mlp_ae_forward.1} parent=1 // pred_fallthru
      _
    // Predicated region
    $region10: #{mlp_ae_forward.1} parent=1 // pred_check
      _
    $region11: #{mlp_ae_forward.1} parent=1 // pred_check_branch
      %21 = sbr.rel (0) target = $region13
    $region12: #{mlp_ae_forward.1} parent=1 // pred_region
      _
    $region13: #{mlp_ae_forward.1} parent=1 // pred_fallthru
      _
    // Predicated region
    $region14: #{mlp_ae_forward.1} parent=1 // pred_check
      _
    $region15: #{mlp_ae_forward.1} parent=1 // pred_check_branch
      %23 = sbr.rel (0) target = $region17
    $region16: #{mlp_ae_forward.1} parent=1 // pred_region
      _
    $region17: #{mlp_ae_forward.1} parent=1 // pred_fallthru
      _
    // Predicated region
    $region18: #{mlp_ae_forward.1} parent=1 // pred_check
      _
    $region19: #{mlp_ae_forward.1} parent=1 // pred_check_branch
      %25 = sbr.rel (0) target = $region21
    $region20: #{mlp_ae_forward.1} parent=1 // pred_region
      _
    $region21: #{mlp_ae_forward.1} parent=1 // pred_fallthru
      _
    // Predicated region
    $region22: #{mlp_ae_forward.1} parent=1 // pred_check
      _
    $region23: #{mlp_ae_forward.1} parent=1 // pred_check_branch
      %27 = sbr.rel (0) target = $region25
    $region24: #{mlp_ae_forward.1} parent=1 // pred_region
      _
    $region25: #{mlp_ae_forward.1} parent=1 // pred_fallthru
      _
    // Predicated region
    $region26: #{mlp_ae_forward.1} parent=1 // pred_check
      _
    $region27: #{mlp_ae_forward.1} parent=1 // pred_check_branch
      %29 = sbr.rel (0) target = $region29
    $region28: #{mlp_ae_forward.1} parent=1 // pred_region
      _
    $region29: #{mlp_ae_forward.1} parent=1 // pred_fallthru
      _
    %v30 = vld [vmem:[%s0] sm:$0xff]
    %v31 = vld [vmem:[%s1] sm:$0xff]
    %v32 = vld [vmem:[%s1 + $0x8] sm:$0xff]
    %v33 = vld [vmem:[%s1 + $0x10] sm:$0xff]
    %v34 = vld [vmem:[%s1 + $0x18] sm:$0xff]
    %v35 = vld [vmem:[%s1 + $0x20] sm:$0xff]
    %v36 = vld [vmem:[%s1 + $0x28] sm:$0xff]
    %v37 = vld [vmem:[%s1 + $0x30] sm:$0xff]
    %v38 = vld [vmem:[%s1 + $0x38] sm:$0xff]
    %v39 = vld [vmem:[%s1 + $0x40] sm:$0xff]
    %v40 = vld [vmem:[%s1 + $0x48] sm:$0xff]
    %v41 = vld [vmem:[%s1 + $0x50] sm:$0xff]
    %v42 = vld [vmem:[%s1 + $0x58] sm:$0xff]
    %v43 = vld [vmem:[%s1 + $0x60] sm:$0xff]
    %v44 = vld [vmem:[%s1 + $0x68] sm:$0xff]
    %v45 = vld [vmem:[%s1 + $0x70] sm:$0xff]
    %v46 = vld [vmem:[%s1 + $0x78] sm:$0xff]
    %47 = vmatprep.subr.mxu0 0.0
    %48 = vmatpush1.msra.mxu0 %v46
    %49 = vmatprep.subr.mxu0 0.0
    %50 = vmatpush1.msra.mxu0 %v45
    %51 = vmatprep.subr.mxu0 0.0
    %52 = vmatpush1.msra.mxu0 %v44
    %53 = vmatprep.subr.mxu0 0.0
    %54 = vmatpush1.msra.mxu0 %v43
    %55 = vmatprep.subr.mxu0 0.0
    %56 = vmatpush1.msra.mxu0 %v42
    %57 = vmatprep.subr.mxu0 0.0
    %58 = vmatpush1.msra.mxu0 %v41
    %59 = vmatprep.subr.mxu0 0.0
    %60 = vmatpush1.msra.mxu0 %v40
    %61 = vmatprep.subr.mxu0 0.0
    %62 = vmatpush1.msra.mxu0 %v39
    %63 = vmatprep.subr.mxu0 0.0
    %64 = vmatpush1.msra.mxu0 %v38
    %65 = vmatprep.subr.mxu0 0.0
    %66 = vmatpush1.msra.mxu0 %v37
    %67 = vmatprep.subr.mxu0 0.0
    %68 = vmatpush1.msra.mxu0 %v36
    %69 = vmatprep.subr.mxu0 0.0
    %70 = vmatpush1.msra.mxu0 %v35
    %71 = vmatprep.subr.mxu0 0.0
    %72 = vmatpush1.msra.mxu0 %v34
    %73 = vmatprep.subr.mxu0 0.0
    %74 = vmatpush1.msra.mxu0 %v33
    %75 = vmatprep.subr.mxu0 0.0
    %76 = vmatpush1.msra.mxu0 %v32
    %77 = vmatprep.subr.mxu0 0.0
    %78 = vmatpush1.msra.mxu0 %v31
    %79 = vmatprep.subr.mxu0 0.0
    %80 = vmatpush2.msra.mxu0 0.0
    %81 = vmatprep.subr.mxu0 0.0
    %82 = vmatpush2.msra.mxu0 0.0
    %83 = vmatprep.subr.mxu0 0.0
    %84 = vmatpush2.msra.mxu0 0.0
    %85 = vmatprep.subr.mxu0 0.0
    %86 = vmatpush2.msra.mxu0 0.0
    %87 = vmatprep.subr.mxu0 0.0
    %88 = vmatpush2.msra.mxu0 0.0
    %89 = vmatprep.subr.mxu0 0.0
    %90 = vmatpush2.msra.mxu0 0.0
    %91 = vmatprep.subr.mxu0 0.0
    %92 = vmatpush2.msra.mxu0 0.0
    %93 = vmatprep.subr.mxu0 0.0
    %94 = vmatpush2.msra.mxu0 0.0
    %95 = vmatprep.subr.mxu0 0.0
    %96 = vmatpush2.msra.mxu0 0.0
    %97 = vmatprep.subr.mxu0 0.0
    %98 = vmatpush2.msra.mxu0 0.0
    %99 = vmatprep.subr.mxu0 0.0
    %100 = vmatpush2.msra.mxu0 0.0
    %101 = vmatprep.subr.mxu0 0.0
    %102 = vmatpush2.msra.mxu0 0.0
    %103 = vmatprep.subr.mxu0 0.0
    %104 = vmatpush2.msra.mxu0 0.0
    %105 = vmatprep.subr.mxu0 0.0
    %106 = vmatpush2.msra.mxu0 0.0
    %107 = vmatprep.subr.mxu0 0.0
    %108 = vmatpush2.msra.mxu0 0.0
    %109 = vmatprep.subr.mxu0 0.0
    %110 = vmatpush2.msra.mxu0 0.0
    %111 = vmatprep.mubr.f32.mxu0 0.0
    %112 = vmatmul.mubr.f32.gmra.mxu0 %v30
    %v113 = vpop.f32.mrf.mxu0
    %v114 = vadd.f32 0.0, %v113
    %v115 = vpop.f32.mrf.mxu0
    %116 = vdwg.mxu0
    %v117 = vmax.f32 %v114, 0.0
    %v118 = vld [vmem:[%s2] sm:$0xff]
    %v119 = vld [vmem:[%s2 + $0x8] sm:$0xff]
    %v120 = vld [vmem:[%s2 + $0x10] sm:$0xff]
    %v121 = vld [vmem:[%s2 + $0x18] sm:$0xff]
    %v122 = vld [vmem:[%s2 + $0x20] sm:$0xff]
    %v123 = vld [vmem:[%s2 + $0x28] sm:$0xff]
    %v124 = vld [vmem:[%s2 + $0x30] sm:$0xff]
    %v125 = vld [vmem:[%s2 + $0x38] sm:$0xff]
    %v126 = vld [vmem:[%s2 + $0x40] sm:$0xff]
    %v127 = vld [vmem:[%s2 + $0x48] sm:$0xff]
    %v128 = vld [vmem:[%s2 + $0x50] sm:$0xff]
    %v129 = vld [vmem:[%s2 + $0x58] sm:$0xff]
    %v130 = vld [vmem:[%s2 + $0x60] sm:$0xff]
    %v131 = vld [vmem:[%s2 + $0x68] sm:$0xff]
    %v132 = vld [vmem:[%s2 + $0x70] sm:$0xff]
    %v133 = vld [vmem:[%s2 + $0x78] sm:$0xff]
    %134 = vmatprep.subr.mxu0 0.0
    %135 = vmatpush1.msra.mxu0 %v133
    %136 = vmatprep.subr.mxu0 0.0
    %137 = vmatpush1.msra.mxu0 %v132
    %138 = vmatprep.subr.mxu0 0.0
    %139 = vmatpush1.msra.mxu0 %v131
    %140 = vmatprep.subr.mxu0 0.0
    %141 = vmatpush1.msra.mxu0 %v130
    %142 = vmatprep.subr.mxu0 0.0
    %143 = vmatpush1.msra.mxu0 %v129
    %144 = vmatprep.subr.mxu0 0.0
    %145 = vmatpush1.msra.mxu0 %v128
    %146 = vmatprep.subr.mxu0 0.0
    %147 = vmatpush1.msra.mxu0 %v127
    %148 = vmatprep.subr.mxu0 0.0
    %149 = vmatpush1.msra.mxu0 %v126
    %150 = vmatprep.subr.mxu0 0.0
    %151 = vmatpush1.msra.mxu0 %v125
    %152 = vmatprep.subr.mxu0 0.0
    %153 = vmatpush1.msra.mxu0 %v124
    %154 = vmatprep.subr.mxu0 0.0
    %155 = vmatpush1.msra.mxu0 %v123
    %156 = vmatprep.subr.mxu0 0.0
    %157 = vmatpush1.msra.mxu0 %v122
    %158 = vmatprep.subr.mxu0 0.0
    %159 = vmatpush1.msra.mxu0 %v121
    %160 = vmatprep.subr.mxu0 0.0
    %161 = vmatpush1.msra.mxu0 %v120
    %162 = vmatprep.subr.mxu0 0.0
    %163 = vmatpush1.msra.mxu0 %v119
    %164 = vmatprep.subr.mxu0 0.0
    %165 = vmatpush1.msra.mxu0 %v118
    %166 = vmatprep.subr.mxu0 0.0
    %167 = vmatpush2.msra.mxu0 0.0
    %168 = vmatprep.subr.mxu0 0.0
    %169 = vmatpush2.msra.mxu0 0.0
    %170 = vmatprep.subr.mxu0 0.0
    %171 = vmatpush2.msra.mxu0 0.0
    %172 = vmatprep.subr.mxu0 0.0
    %173 = vmatpush2.msra.mxu0 0.0
    %174 = vmatprep.subr.mxu0 0.0
    %175 = vmatpush2.msra.mxu0 0.0
    %176 = vmatprep.subr.mxu0 0.0
    %177 = vmatpush2.msra.mxu0 0.0
    %178 = vmatprep.subr.mxu0 0.0
    %179 = vmatpush2.msra.mxu0 0.0
    %180 = vmatprep.subr.mxu0 0.0
    %181 = vmatpush2.msra.mxu0 0.0
    %182 = vmatprep.subr.mxu0 0.0
    %183 = vmatpush2.msra.mxu0 0.0
    %184 = vmatprep.subr.mxu0 0.0
    %185 = vmatpush2.msra.mxu0 0.0
    %186 = vmatprep.subr.mxu0 0.0
    %187 = vmatpush2.msra.mxu0 0.0
    %188 = vmatprep.subr.mxu0 0.0
    %189 = vmatpush2.msra.mxu0 0.0
    %190 = vmatprep.subr.mxu0 0.0
    %191 = vmatpush2.msra.mxu0 0.0
    %192 = vmatprep.subr.mxu0 0.0
    %193 = vmatpush2.msra.mxu0 0.0
    %194 = vmatprep.subr.mxu0 0.0
    %195 = vmatpush2.msra.mxu0 0.0
    %196 = vmatprep.subr.mxu0 0.0
    %197 = vmatpush2.msra.mxu0 0.0
    %198 = vmatprep.mubr.f32.mxu0 0.0
    %199 = vmatmul.mubr.f32.gmra.mxu0 %v117
    %v200 = vpop.f32.mrf.mxu0
    %v201 = vadd.f32 0.0, %v200
    %v202 = vpop.f32.mrf.mxu0
    %203 = vdwg.mxu0
    %v204 = vmax.f32 %v201, 0.0
    %v205 = vld [vmem:[%s3] sm:$0xff]
    %v206 = vld [vmem:[%s3 + $0x8] sm:$0xff]
    %v207 = vld [vmem:[%s3 + $0x10] sm:$0xff]
    %v208 = vld [vmem:[%s3 + $0x18] sm:$0xff]
    %v209 = vld [vmem:[%s3 + $0x20] sm:$0xff]
    %v210 = vld [vmem:[%s3 + $0x28] sm:$0xff]
    %v211 = vld [vmem:[%s3 + $0x30] sm:$0xff]
    %v212 = vld [vmem:[%s3 + $0x38] sm:$0xff]
    %v213 = vld [vmem:[%s3 + $0x40] sm:$0xff]
    %v214 = vld [vmem:[%s3 + $0x48] sm:$0xff]
    %v215 = vld [vmem:[%s3 + $0x50] sm:$0xff]
    %v216 = vld [vmem:[%s3 + $0x58] sm:$0xff]
    %v217 = vld [vmem:[%s3 + $0x60] sm:$0xff]
    %v218 = vld [vmem:[%s3 + $0x68] sm:$0xff]
    %v219 = vld [vmem:[%s3 + $0x70] sm:$0xff]
    %v220 = vld [vmem:[%s3 + $0x78] sm:$0xff]
    %221 = vmatprep.subr.mxu0 0.0
    %222 = vmatpush1.msra.mxu0 %v220
    %223 = vmatprep.subr.mxu0 0.0
    %224 = vmatpush1.msra.mxu0 %v219
    %225 = vmatprep.subr.mxu0 0.0
    %226 = vmatpush1.msra.mxu0 %v218
    %227 = vmatprep.subr.mxu0 0.0
    %228 = vmatpush1.msra.mxu0 %v217
    %229 = vmatprep.subr.mxu0 0.0
    %230 = vmatpush1.msra.mxu0 %v216
    %231 = vmatprep.subr.mxu0 0.0
    %232 = vmatpush1.msra.mxu0 %v215
    %233 = vmatprep.subr.mxu0 0.0
    %234 = vmatpush1.msra.mxu0 %v214
    %235 = vmatprep.subr.mxu0 0.0
    %236 = vmatpush1.msra.mxu0 %v213
    %237 = vmatprep.subr.mxu0 0.0
    %238 = vmatpush1.msra.mxu0 %v212
    %239 = vmatprep.subr.mxu0 0.0
    %240 = vmatpush1.msra.mxu0 %v211
    %241 = vmatprep.subr.mxu0 0.0
    %242 = vmatpush1.msra.mxu0 %v210
    %243 = vmatprep.subr.mxu0 0.0
    %244 = vmatpush1.msra.mxu0 %v209
    %245 = vmatprep.subr.mxu0 0.0
    %246 = vmatpush1.msra.mxu0 %v208
    %247 = vmatprep.subr.mxu0 0.0
    %248 = vmatpush1.msra.mxu0 %v207
    %249 = vmatprep.subr.mxu0 0.0
    %250 = vmatpush1.msra.mxu0 %v206
    %251 = vmatprep.subr.mxu0 0.0
    %252 = vmatpush1.msra.mxu0 %v205
    %253 = vmatprep.subr.mxu0 0.0
    %254 = vmatpush2.msra.mxu0 0.0
    %255 = vmatprep.subr.mxu0 0.0
    %256 = vmatpush2.msra.mxu0 0.0
    %257 = vmatprep.subr.mxu0 0.0
    %258 = vmatpush2.msra.mxu0 0.0
    %259 = vmatprep.subr.mxu0 0.0
    %260 = vmatpush2.msra.mxu0 0.0
    %261 = vmatprep.subr.mxu0 0.0
    %262 = vmatpush2.msra.mxu0 0.0
    %263 = vmatprep.subr.mxu0 0.0
    %264 = vmatpush2.msra.mxu0 0.0
    %265 = vmatprep.subr.mxu0 0.0
    %266 = vmatpush2.msra.mxu0 0.0
    %267 = vmatprep.subr.mxu0 0.0
    %268 = vmatpush2.msra.mxu0 0.0
    %269 = vmatprep.subr.mxu0 0.0
    %270 = vmatpush2.msra.mxu0 0.0
    %271 = vmatprep.subr.mxu0 0.0
    %272 = vmatpush2.msra.mxu0 0.0
    %273 = vmatprep.subr.mxu0 0.0
    %274 = vmatpush2.msra.mxu0 0.0
    %275 = vmatprep.subr.mxu0 0.0
    %276 = vmatpush2.msra.mxu0 0.0
    %277 = vmatprep.subr.mxu0 0.0
    %278 = vmatpush2.msra.mxu0 0.0
    %279 = vmatprep.subr.mxu0 0.0
    %280 = vmatpush2.msra.mxu0 0.0
    %281 = vmatprep.subr.mxu0 0.0
    %282 = vmatpush2.msra.mxu0 0.0
    %283 = vmatprep.subr.mxu0 0.0
    %284 = vmatpush2.msra.mxu0 0.0
    %285 = vmatprep.mubr.f32.mxu0 0.0
    %286 = vmatmul.mubr.f32.gmra.mxu0 %v204
    %v287 = vpop.f32.mrf.mxu0
    %v288 = vadd.f32 0.0, %v287
    %v289 = vpop.f32.mrf.mxu0
    %290 = vdwg.mxu0
    %v291 = vld [vmem:[%s4] sm:$0xff]
    %v292 = vld [vmem:[%s4 + $0x8] sm:$0xff]
    %v293 = vld [vmem:[%s4 + $0x10] sm:$0xff]
    %v294 = vld [vmem:[%s4 + $0x18] sm:$0xff]
    %v295 = vld [vmem:[%s4 + $0x20] sm:$0xff]
    %v296 = vld [vmem:[%s4 + $0x28] sm:$0xff]
    %v297 = vld [vmem:[%s4 + $0x30] sm:$0xff]
    %v298 = vld [vmem:[%s4 + $0x38] sm:$0xff]
    %v299 = vld [vmem:[%s4 + $0x40] sm:$0xff]
    %v300 = vld [vmem:[%s4 + $0x48] sm:$0xff]
    %v301 = vld [vmem:[%s4 + $0x50] sm:$0xff]
    %v302 = vld [vmem:[%s4 + $0x58] sm:$0xff]
    %v303 = vld [vmem:[%s4 + $0x60] sm:$0xff]
    %v304 = vld [vmem:[%s4 + $0x68] sm:$0xff]
    %v305 = vld [vmem:[%s4 + $0x70] sm:$0xff]
    %v306 = vld [vmem:[%s4 + $0x78] sm:$0xff]
    %307 = vmatprep.subr.mxu0 0.0
    %308 = vmatpush1.msra.mxu0 %v306
    %309 = vmatprep.subr.mxu0 0.0
    %310 = vmatpush1.msra.mxu0 %v305
    %311 = vmatprep.subr.mxu0 0.0
    %312 = vmatpush1.msra.mxu0 %v304
    %313 = vmatprep.subr.mxu0 0.0
    %314 = vmatpush1.msra.mxu0 %v303
    %315 = vmatprep.subr.mxu0 0.0
    %316 = vmatpush1.msra.mxu0 %v302
    %317 = vmatprep.subr.mxu0 0.0
    %318 = vmatpush1.msra.mxu0 %v301
    %319 = vmatprep.subr.mxu0 0.0
    %320 = vmatpush1.msra.mxu0 %v300
    %321 = vmatprep.subr.mxu0 0.0
    %322 = vmatpush1.msra.mxu0 %v299
    %323 = vmatprep.subr.mxu0 0.0
    %324 = vmatpush1.msra.mxu0 %v298
    %325 = vmatprep.subr.mxu0 0.0
    %326 = vmatpush1.msra.mxu0 %v297
    %327 = vmatprep.subr.mxu0 0.0
    %328 = vmatpush1.msra.mxu0 %v296
    %329 = vmatprep.subr.mxu0 0.0
    %330 = vmatpush1.msra.mxu0 %v295
    %331 = vmatprep.subr.mxu0 0.0
    %332 = vmatpush1.msra.mxu0 %v294
    %333 = vmatprep.subr.mxu0 0.0
    %334 = vmatpush1.msra.mxu0 %v293
    %335 = vmatprep.subr.mxu0 0.0
    %336 = vmatpush1.msra.mxu0 %v292
    %337 = vmatprep.subr.mxu0 0.0
    %338 = vmatpush1.msra.mxu0 %v291
    %339 = vmatprep.subr.mxu0 0.0
    %340 = vmatpush2.msra.mxu0 0.0
    %341 = vmatprep.subr.mxu0 0.0
    %342 = vmatpush2.msra.mxu0 0.0
    %343 = vmatprep.subr.mxu0 0.0
    %344 = vmatpush2.msra.mxu0 0.0
    %345 = vmatprep.subr.mxu0 0.0
    %346 = vmatpush2.msra.mxu0 0.0
    %347 = vmatprep.subr.mxu0 0.0
    %348 = vmatpush2.msra.mxu0 0.0
    %349 = vmatprep.subr.mxu0 0.0
    %350 = vmatpush2.msra.mxu0 0.0
    %351 = vmatprep.subr.mxu0 0.0
    %352 = vmatpush2.msra.mxu0 0.0
    %353 = vmatprep.subr.mxu0 0.0
    %354 = vmatpush2.msra.mxu0 0.0
    %355 = vmatprep.subr.mxu0 0.0
    %356 = vmatpush2.msra.mxu0 0.0
    %357 = vmatprep.subr.mxu0 0.0
    %358 = vmatpush2.msra.mxu0 0.0
    %359 = vmatprep.subr.mxu0 0.0
    %360 = vmatpush2.msra.mxu0 0.0
    %361 = vmatprep.subr.mxu0 0.0
    %362 = vmatpush2.msra.mxu0 0.0
    %363 = vmatprep.subr.mxu0 0.0
    %364 = vmatpush2.msra.mxu0 0.0
    %365 = vmatprep.subr.mxu0 0.0
    %366 = vmatpush2.msra.mxu0 0.0
    %367 = vmatprep.subr.mxu0 0.0
    %368 = vmatpush2.msra.mxu0 0.0
    %369 = vmatprep.subr.mxu0 0.0
    %370 = vmatpush2.msra.mxu0 0.0
    %371 = vmatprep.mubr.f32.mxu0 0.0
    %372 = vmatmul.mubr.f32.gmra.mxu0 %v288
    %v373 = vpop.f32.mrf.mxu0
    %v374 = vadd.f32 0.0, %v373
    %v375 = vpop.f32.mrf.mxu0
    %376 = vdwg.mxu0
    %v377 = vmax.f32 %v374, 0.0
    %v378 = vld [vmem:[%s5] sm:$0xff]
    %v379 = vld [vmem:[%s5 + $0x8] sm:$0xff]
    %v380 = vld [vmem:[%s5 + $0x10] sm:$0xff]
    %v381 = vld [vmem:[%s5 + $0x18] sm:$0xff]
    %v382 = vld [vmem:[%s5 + $0x20] sm:$0xff]
    %v383 = vld [vmem:[%s5 + $0x28] sm:$0xff]
    %v384 = vld [vmem:[%s5 + $0x30] sm:$0xff]
    %v385 = vld [vmem:[%s5 + $0x38] sm:$0xff]
    %v386 = vld [vmem:[%s5 + $0x40] sm:$0xff]
    %v387 = vld [vmem:[%s5 + $0x48] sm:$0xff]
    %v388 = vld [vmem:[%s5 + $0x50] sm:$0xff]
    %v389 = vld [vmem:[%s5 + $0x58] sm:$0xff]
    %v390 = vld [vmem:[%s5 + $0x60] sm:$0xff]
    %v391 = vld [vmem:[%s5 + $0x68] sm:$0xff]
    %v392 = vld [vmem:[%s5 + $0x70] sm:$0xff]
    %v393 = vld [vmem:[%s5 + $0x78] sm:$0xff]
    %394 = vmatprep.subr.mxu0 0.0
    %395 = vmatpush1.msra.mxu0 %v393
    %396 = vmatprep.subr.mxu0 0.0
    %397 = vmatpush1.msra.mxu0 %v392
    %398 = vmatprep.subr.mxu0 0.0
    %399 = vmatpush1.msra.mxu0 %v391
    %400 = vmatprep.subr.mxu0 0.0
    %401 = vmatpush1.msra.mxu0 %v390
    %402 = vmatprep.subr.mxu0 0.0
    %403 = vmatpush1.msra.mxu0 %v389
    %404 = vmatprep.subr.mxu0 0.0
    %405 = vmatpush1.msra.mxu0 %v388
    %406 = vmatprep.subr.mxu0 0.0
    %407 = vmatpush1.msra.mxu0 %v387
    %408 = vmatprep.subr.mxu0 0.0
    %409 = vmatpush1.msra.mxu0 %v386
    %410 = vmatprep.subr.mxu0 0.0
    %411 = vmatpush1.msra.mxu0 %v385
    %412 = vmatprep.subr.mxu0 0.0
    %413 = vmatpush1.msra.mxu0 %v384
    %414 = vmatprep.subr.mxu0 0.0
    %415 = vmatpush1.msra.mxu0 %v383
    %416 = vmatprep.subr.mxu0 0.0
    %417 = vmatpush1.msra.mxu0 %v382
    %418 = vmatprep.subr.mxu0 0.0
    %419 = vmatpush1.msra.mxu0 %v381
    %420 = vmatprep.subr.mxu0 0.0
    %421 = vmatpush1.msra.mxu0 %v380
    %422 = vmatprep.subr.mxu0 0.0
    %423 = vmatpush1.msra.mxu0 %v379
    %424 = vmatprep.subr.mxu0 0.0
    %425 = vmatpush1.msra.mxu0 %v378
    %426 = vmatprep.subr.mxu0 0.0
    %427 = vmatpush2.msra.mxu0 0.0
    %428 = vmatprep.subr.mxu0 0.0
    %429 = vmatpush2.msra.mxu0 0.0
    %430 = vmatprep.subr.mxu0 0.0
    %431 = vmatpush2.msra.mxu0 0.0
    %432 = vmatprep.subr.mxu0 0.0
    %433 = vmatpush2.msra.mxu0 0.0
    %434 = vmatprep.subr.mxu0 0.0
    %435 = vmatpush2.msra.mxu0 0.0
    %436 = vmatprep.subr.mxu0 0.0
    %437 = vmatpush2.msra.mxu0 0.0
    %438 = vmatprep.subr.mxu0 0.0
    %439 = vmatpush2.msra.mxu0 0.0
    %440 = vmatprep.subr.mxu0 0.0
    %441 = vmatpush2.msra.mxu0 0.0
    %442 = vmatprep.subr.mxu0 0.0
    %443 = vmatpush2.msra.mxu0 0.0
    %444 = vmatprep.subr.mxu0 0.0
    %445 = vmatpush2.msra.mxu0 0.0
    %446 = vmatprep.subr.mxu0 0.0
    %447 = vmatpush2.msra.mxu0 0.0
    %448 = vmatprep.subr.mxu0 0.0
    %449 = vmatpush2.msra.mxu0 0.0
    %450 = vmatprep.subr.mxu0 0.0
    %451 = vmatpush2.msra.mxu0 0.0
    %452 = vmatprep.subr.mxu0 0.0
    %453 = vmatpush2.msra.mxu0 0.0
    %454 = vmatprep.subr.mxu0 0.0
    %455 = vmatpush2.msra.mxu0 0.0
    %456 = vmatprep.subr.mxu0 0.0
    %457 = vmatpush2.msra.mxu0 0.0
    %458 = vmatprep.mubr.f32.mxu0 0.0
    %459 = vmatmul.mubr.f32.gmra.mxu0 %v377
    %v460 = vpop.f32.mrf.mxu0
    %v461 = vadd.f32 0.0, %v460
    %v462 = vpop.f32.mrf.mxu0
    %463 = vdwg.mxu0
    %v464 = vmax.f32 %v461, 0.0
    %v465 = vld [vmem:[%s6] sm:$0xff]
    %v466 = vld [vmem:[%s6 + $0x8] sm:$0xff]
    %v467 = vld [vmem:[%s6 + $0x10] sm:$0xff]
    %v468 = vld [vmem:[%s6 + $0x18] sm:$0xff]
    %v469 = vld [vmem:[%s6 + $0x20] sm:$0xff]
    %v470 = vld [vmem:[%s6 + $0x28] sm:$0xff]
    %v471 = vld [vmem:[%s6 + $0x30] sm:$0xff]
    %v472 = vld [vmem:[%s6 + $0x38] sm:$0xff]
    %v473 = vld [vmem:[%s6 + $0x40] sm:$0xff]
    %v474 = vld [vmem:[%s6 + $0x48] sm:$0xff]
    %v475 = vld [vmem:[%s6 + $0x50] sm:$0xff]
    %v476 = vld [vmem:[%s6 + $0x58] sm:$0xff]
    %v477 = vld [vmem:[%s6 + $0x60] sm:$0xff]
    %v478 = vld [vmem:[%s6 + $0x68] sm:$0xff]
    %v479 = vld [vmem:[%s6 + $0x70] sm:$0xff]
    %v480 = vld [vmem:[%s6 + $0x78] sm:$0xff]
    %481 = vmatprep.subr.mxu0 0.0
    %482 = vmatpush1.msra.mxu0 %v480
    %483 = vmatprep.subr.mxu0 0.0
    %484 = vmatpush1.msra.mxu0 %v479
    %485 = vmatprep.subr.mxu0 0.0
    %486 = vmatpush1.msra.mxu0 %v478
    %487 = vmatprep.subr.mxu0 0.0
    %488 = vmatpush1.msra.mxu0 %v477
    %489 = vmatprep.subr.mxu0 0.0
    %490 = vmatpush1.msra.mxu0 %v476
    %491 = vmatprep.subr.mxu0 0.0
    %492 = vmatpush1.msra.mxu0 %v475
    %493 = vmatprep.subr.mxu0 0.0
    %494 = vmatpush1.msra.mxu0 %v474
    %495 = vmatprep.subr.mxu0 0.0
    %496 = vmatpush1.msra.mxu0 %v473
    %497 = vmatprep.subr.mxu0 0.0
    %498 = vmatpush1.msra.mxu0 %v472
    %499 = vmatprep.subr.mxu0 0.0
    %500 = vmatpush1.msra.mxu0 %v471
    %501 = vmatprep.subr.mxu0 0.0
    %502 = vmatpush1.msra.mxu0 %v470
    %503 = vmatprep.subr.mxu0 0.0
    %504 = vmatpush1.msra.mxu0 %v469
    %505 = vmatprep.subr.mxu0 0.0
    %506 = vmatpush1.msra.mxu0 %v468
    %507 = vmatprep.subr.mxu0 0.0
    %508 = vmatpush1.msra.mxu0 %v467
    %509 = vmatprep.subr.mxu0 0.0
    %510 = vmatpush1.msra.mxu0 %v466
    %511 = vmatprep.subr.mxu0 0.0
    %512 = vmatpush1.msra.mxu0 %v465
    %513 = vmatprep.subr.mxu0 0.0
    %514 = vmatpush2.msra.mxu0 0.0
    %515 = vmatprep.subr.mxu0 0.0
    %516 = vmatpush2.msra.mxu0 0.0
    %517 = vmatprep.subr.mxu0 0.0
    %518 = vmatpush2.msra.mxu0 0.0
    %519 = vmatprep.subr.mxu0 0.0
    %520 = vmatpush2.msra.mxu0 0.0
    %521 = vmatprep.subr.mxu0 0.0
    %522 = vmatpush2.msra.mxu0 0.0
    %523 = vmatprep.subr.mxu0 0.0
    %524 = vmatpush2.msra.mxu0 0.0
    %525 = vmatprep.subr.mxu0 0.0
    %526 = vmatpush2.msra.mxu0 0.0
    %527 = vmatprep.subr.mxu0 0.0
    %528 = vmatpush2.msra.mxu0 0.0
    %529 = vmatprep.subr.mxu0 0.0
    %530 = vmatpush2.msra.mxu0 0.0
    %531 = vmatprep.subr.mxu0 0.0
    %532 = vmatpush2.msra.mxu0 0.0
    %533 = vmatprep.subr.mxu0 0.0
    %534 = vmatpush2.msra.mxu0 0.0
    %535 = vmatprep.subr.mxu0 0.0
    %536 = vmatpush2.msra.mxu0 0.0
    %537 = vmatprep.subr.mxu0 0.0
    %538 = vmatpush2.msra.mxu0 0.0
    %539 = vmatprep.subr.mxu0 0.0
    %540 = vmatpush2.msra.mxu0 0.0
    %541 = vmatprep.subr.mxu0 0.0
    %542 = vmatpush2.msra.mxu0 0.0
    %543 = vmatprep.subr.mxu0 0.0
    %544 = vmatpush2.msra.mxu0 0.0
    %545 = vmatprep.mubr.f32.mxu0 0.0
    %546 = vmatmul.mubr.f32.gmra.mxu0 %v464
    %v547 = vpop.f32.mrf.mxu0
    %v548 = vadd.f32 0.0, %v547
    %v549 = vpop.f32.mrf.mxu0
    %550 = vdwg.mxu0
    %551 = vst [vmem:[#allocation4] sm:$0xff] %v288
    %552 = vst [vmem:[#allocation2] sm:$0xff] %v548
    // Predicated region
    $region30: #{mlp_ae_forward.1} parent=1 // pred_check
      _
    $region31: #{mlp_ae_forward.1} parent=1 // pred_check_branch
      %554 = sbr.rel (0) target = $region33
    $region32: #{mlp_ae_forward.1} parent=1 // pred_region
      %s556 = ssub.s32 128, 128
      %557 = vsyncadd [#allocation3], %s556
      %s559 = sshll.u32 [#allocation2], 4
      %s560 = int_to_ptr.vmem [resolvable:$true] %s559
      %562 = dma.vmem_to_hbm [thread:$0]  %s560, 128, %s7, [#allocation3]
    $region33: #{mlp_ae_forward.1} parent=1 // pred_fallthru
      _
    // Predicated region
    $region34: #{mlp_ae_forward.1} parent=1 // pred_check
      _
    $region35: #{mlp_ae_forward.1} parent=1 // pred_check_branch
      %564 = sbr.rel (0) target = $region37
    $region36: #{mlp_ae_forward.1} parent=1 // pred_region
      %s566 = ssub.s32 128, 128
      %567 = vsyncadd [#allocation5], %s566
      %s569 = sshll.u32 [#allocation4], 4
      %s570 = int_to_ptr.vmem [resolvable:$true] %s569
      %572 = dma.vmem_to_hbm [thread:$0]  %s570, 128, %s8, [#allocation5]
    $region37: #{mlp_ae_forward.1} parent=1 // pred_fallthru
      _
    // Predicated region
    $region38: #{mlp_ae_forward.1} parent=1 // pred_check
      _
    $region39: #{mlp_ae_forward.1} parent=1 // pred_check_branch
      %574 = sbr.rel (0) target = $region41
    $region40: #{mlp_ae_forward.1} parent=1 // pred_region
      %575 = dma.done [#allocation3], 128
    $region41: #{mlp_ae_forward.1} parent=1 // pred_fallthru
      _
    // Predicated region
    $region42: #{mlp_ae_forward.1} parent=1 // pred_check
      _
    $region43: #{mlp_ae_forward.1} parent=1 // pred_check_branch
      %577 = sbr.rel (0) target = $region45
    $region44: #{mlp_ae_forward.1} parent=1 // pred_region
      %578 = dma.done [#allocation5], 128
    $region45: #{mlp_ae_forward.1} parent=1 // pred_fallthru
      _
    %579 = vsyncpa [#allocation3], 1
    %580 = vsyncpa [#allocation5], 1

</llo_original>
